<compile_context>
chip_gen: v5e
topology: v5e:2x2
jax: 0.10.0
libtpu: 0.0.40
codegen_flags: <defaults>
</compile_context>

<pallas_src>
import functools
import math

import jax
import jax.numpy as jnp
from jax.experimental import pallas as pl
from jax.experimental.pallas import tpu as pltpu

LANES = 128            # lane-dense trailing dim of the streamed slab
MAX_BLOCK_ROWS = 8192  # DMA tile: 8192*128*4B = 4 MiB per f32 input (2 MiB bf16)
CHUNK_ROWS = 1024      # compute sub-tile inside a DMA block (bounds VMEM temporaries)


def _round_up(x, m):
    return -(-x // m) * m


def _num_tensorcores():
    """2 on multi-TensorCore chips (v4 / v5p / v7x), else 1 (v5e / v6e)."""
    try:
        kind = jax.devices()[0].device_kind.lower()
    except Exception:
        return 1
    return 2 if any(tag in kind for tag in ("v4", "v5p", "v7")) else 1


def _focal_bce_kernel(y_pred_ref, y_true_ref, out_ref, *,
                      alpha, gamma, gamma_is_int, eps, steps, block_rows,
                      chunk_rows, last_block, valid_in_last, needs_mask,
                      hard_targets):
    p_idx = pl.program_id(0)          # parallel chunk
    s_idx = pl.program_id(1)          # reduction step within chunk

    # Output block (1, 8, 128) is resident across the reduction axis ->
    # it is the accumulator; init on the first step of each parallel chunk.
    @pl.when(s_idx == 0)
    def _init():
        out_ref[...] = jnp.zeros_like(out_ref)

    a = jnp.float32(alpha)
    lanes = out_ref.shape[-1]

    def int_pow(x, n):
        # Exponentiation by squaring: pure VPU multiplies, zero EUP traffic.
        if n == 0:
            return jnp.ones_like(x)
        result, base = None, x
        while n:
            if n & 1:
                result = base if result is None else result * base
            n >>= 1
            if n:
                base = base * base
        return result

    def chunk_loss(row0, nrows):
        p = y_pred_ref[pl.ds(row0, nrows), :].astype(jnp.float32)
        y = y_true_ref[pl.ds(row0, nrows), :].astype(jnp.float32)
        # torch.clamp(y_pred, eps, 1 - eps)
        p = jnp.clip(p, jnp.float32(eps), jnp.float32(1.0 - eps))

        if hard_targets:
            # Exact rewrite for binary 0/1 targets: a single log per element.
            is_pos = y > 0.5
            t = jnp.where(is_pos, p, 1.0 - p)           # prob of the true class
            coef = jnp.where(is_pos, a, 1.0 - a)
            if gamma_is_int:
                w = int_pow(1.0 - t, int(gamma))
            else:
                w = jnp.exp(jnp.float32(gamma) * jnp.log(1.0 - t))
            return -coef * w * jnp.log(t)

        # General soft-target-safe form; logs computed once and reused.
        logp = jnp.log(p)
        log1mp = jnp.log(1.0 - p)
        if gamma_is_int:
            w_pos = int_pow(1.0 - p, int(gamma))        # (1-p)^g, VPU only
            w_neg = int_pow(p, int(gamma))              # p^g,     VPU only
        else:
            w_pos = jnp.exp(jnp.float32(gamma) * log1mp)
            w_neg = jnp.exp(jnp.float32(gamma) * logp)
        return (-a * w_pos * y * logp
                - (1.0 - a) * w_neg * (1.0 - y) * log1mp)

    def accum_chunk(row0, nrows, apply_mask):
        loss = chunk_loss(row0, nrows)
        if apply_mask:
            # Block-local element index: <= block_rows*128 (~1M) -> int32-safe.
            rows_i = jax.lax.broadcasted_iota(jnp.int32, loss.shape, 0)
            cols_i = jax.lax.broadcasted_iota(jnp.int32, loss.shape, 1)
            local = (row0 + rows_i) * lanes + cols_i
            loss = jnp.where(local < valid_in_last, loss, jnp.float32(0.0))
        # (nrows, 128) -> (nrows/8, 8, 128): native-tile regroup, VPU adds only.
        psum = loss.reshape(nrows // 8, 8, lanes).sum(axis=0)
        out_ref[...] += psum[None, :, :]

    n_full = block_rows // chunk_rows
    rem = block_rows - n_full * chunk_rows              # multiple of 8

    def process(apply_mask):
        if n_full > 0:
            @pl.loop(0, n_full)
            def _(c):
                row0 = pl.multiple_of(c * chunk_rows, chunk_rows)
                accum_chunk(row0, chunk_rows, apply_mask)
        if rem:
            accum_chunk(n_full * chunk_rows, rem, apply_mask)

    if needs_mask:
        blk = p_idx * steps + s_idx                     # global block index
        # Only the single boundary block pays for the mask.
        @pl.when(blk != last_block)
        def _():
            process(False)

        @pl.when(blk == last_block)
        def _():
            process(True)
    else:
        process(False)


def focal_bce_loss(y_pred, y_true, *, alpha=0.25, gamma=2.0, weight=None,
                   eps=1e-5, reduction="mean", hard_targets=False):
    """Pallas-TPU FocalBCELoss forward. Inputs shaped like the module: (N, C, L...).

    hard_targets=True is an opt-in fast path valid ONLY for 0/1 targets.
    """
    assert y_pred.shape == y_true.shape
    # 'mean' denominator below assumes axis 1 is the channel axis of (N, C, L...).
    assert y_pred.ndim >= 2, "need at least (N, C) so that loss.sum(1) is defined"
    if weight is not None:
        # TODO(synk): per-channel weight (broadcast as (1, C, 1)) not implemented.
        raise NotImplementedError("per-channel weight not supported in this kernel")
    if reduction not in ("mean", "sum"):
        # TODO(synk): reduction='none' would need the unreduced (N, L...) map as output.
        raise NotImplementedError("only 'mean' and 'sum' reductions implemented")

    total_elems = int(y_pred.size)

    # ---- lane-dense 2D slab (zero-copy when size % 128 == 0) ----
    rows = -(-total_elems // LANES)
    pad = rows * LANES - total_elems                    # <= 127 elements
    yp = y_pred.reshape(-1)
    yt = y_true.reshape(-1)
    if pad:
        yp = jnp.pad(yp, (0, pad))
        yt = jnp.pad(yt, (0, pad))
    yp2 = yp.reshape(rows, LANES)
    yt2 = yt.reshape(rows, LANES)

    # ---- tiling plan (static Python math) ----
    num_blocks = max(1, -(-rows // MAX_BLOCK_ROWS))
    block_rows = min(_round_up(-(-rows // num_blocks), 8), MAX_BLOCK_ROWS)
    num_blocks = -(-rows // block_rows)

    if _num_tensorcores() >= 2 and num_blocks >= 2 and num_blocks % 2 == 0:
        par, steps = 2, num_blocks // 2                 # dual-TC chips only
    else:
        par, steps = 1, num_blocks                      # v5e / v6e: single TC

    last_block = num_blocks - 1
    valid_in_last = total_elems - last_block * block_rows * LANES
    needs_mask = valid_in_last != block_rows * LANES

    g = float(gamma)
    gamma_is_int = g.is_integer() and 0.0 <= g <= 16.0

    kernel = functools.partial(
        _focal_bce_kernel, alpha=float(alpha), gamma=g,
        gamma_is_int=gamma_is_int, eps=float(eps), steps=steps,
        block_rows=block_rows, chunk_rows=CHUNK_ROWS, last_block=last_block,
        valid_in_last=int(valid_in_last), needs_mask=bool(needs_mask),
        hard_targets=bool(hard_targets))

    in_itemsize = yp2.dtype.itemsize + yt2.dtype.itemsize
    in_tile_bytes = block_rows * LANES * in_itemsize
    vmem_limit = min(2 * in_tile_bytes + (16 << 20), 64 << 20)

    if hard_targets:
        trans_per = 1 if gamma_is_int else 3
    else:
        trans_per = 2 if gamma_is_int else 4
    processed = num_blocks * block_rows * LANES
    cost = pl.CostEstimate(
        flops=16 * processed,
        transcendentals=trans_per * processed,
        bytes_accessed=in_itemsize * rows * LANES + par * 8 * LANES * 4,
    )

    partials = pl.pallas_call(
        kernel,
        out_shape=jax.ShapeDtypeStruct((par, 8, LANES), jnp.float32),
        grid_spec=pltpu.PrefetchScalarGridSpec(
            num_scalar_prefetch=0,
            grid=(par, steps),
            in_specs=[
                pl.BlockSpec((block_rows, LANES), lambda p, s: (p * steps + s, 0)),
                pl.BlockSpec((block_rows, LANES), lambda p, s: (p * steps + s, 0)),
            ],
            out_specs=pl.BlockSpec((1, 8, LANES), lambda p, s: (p, 0, 0)),
        ),
        compiler_params=pltpu.CompilerParams(
            dimension_semantics=("parallel", "arbitrary"),
            vmem_limit_bytes=int(vmem_limit)),
        cost_estimate=cost,
    )(yp2, yt2)

    total = partials.sum()  # tiny (par, 8, 128) reduction in the wrapper

    if reduction == "mean":
        # loss.sum(1).mean() == total / (numel / C)   (axis 1 == channel axis)
        denom = total_elems // y_pred.shape[1]
        return total / jnp.float32(denom)
    return total  # 'sum'


def _ref_loss(y_pred, y_true, alpha, gamma, eps, reduction):
    yp = jnp.clip(y_pred, eps, 1 - eps)
    loss = (-alpha * (1 - yp) ** gamma * y_true * jnp.log(yp)
            - (1 - alpha) * yp ** gamma * (1 - y_true) * jnp.log(1 - yp))
    m = loss.sum(1)
    return m.mean() if reduction == "mean" else m.sum()


if __name__ == "__main__":
    key = jax.random.PRNGKey(0)
    k1, k2, k3, k4, k5, k6 = jax.random.split(key, 6)

    # --- module-shaped test: (N, C, L), hard binary targets, gamma=2 ---
    N, C, L = 2, 4, 16
    y_pred = jax.random.uniform(k1, (N, C, L), dtype=jnp.float32,
                                minval=0.01, maxval=0.99)
    y_true = (jax.random.uniform(k2, (N, C, L)) > 0.5).astype(jnp.float32)

    out = focal_bce_loss(y_pred, y_true, alpha=0.25, gamma=2.0, eps=1e-5,
                         reduction="mean", hard_targets=True)
    jax.block_until_ready(out)
    ref = _ref_loss(y_pred, y_true, 0.25, 2.0, 1e-5, "mean")
    assert jnp.allclose(out, ref, rtol=1e-4, atol=1e-6), (out, ref)

    # general (soft-target-capable) path on the same inputs
    out2 = focal_bce_loss(y_pred, y_true, reduction="mean", hard_targets=False)
    jax.block_until_ready(out2)
    assert jnp.allclose(out2, ref, rtol=1e-4, atol=1e-6), (out2, ref)

    # --- ragged shape, soft targets, integer gamma=3 (mask + multiply-chain pow) ---
    N2, C2, L2 = 3, 5, 37
    yp_s = jax.random.uniform(k3, (N2, C2, L2), dtype=jnp.float32,
                              minval=0.01, maxval=0.99)
    yt_s = jax.random.uniform(k4, (N2, C2, L2), dtype=jnp.float32)
    out3 = focal_bce_loss(yp_s, yt_s, alpha=0.3, gamma=3.0, reduction="sum")
    jax.block_until_ready(out3)
    ref3 = _ref_loss(yp_s, yt_s, 0.3, 3.0, 1e-5, "sum")
    assert jnp.allclose(out3, ref3, rtol=1e-4, atol=1e-5), (out3, ref3)

    # --- larger case: exercises the in-block chunk loop, remainder chunk,
    #     boundary-block masking, and the non-integer-gamma exp(g*log) path ---
    N3, C3, L3 = 2, 4, 24000
    yp_l = jax.random.uniform(k5, (N3, C3, L3), dtype=jnp.float32,
                              minval=0.01, maxval=0.99)
    yt_l = jax.random.uniform(k6, (N3, C3, L3), dtype=jnp.float32)
    out4 = focal_bce_loss(yp_l, yt_l, alpha=0.25, gamma=1.5, reduction="mean")
    jax.block_until_ready(out4)
    ref4 = _ref_loss(yp_l, yt_l, 0.25, 1.5, 1e-5, "mean")
    assert jnp.allclose(out4, ref4, rtol=1e-4, atol=1e-6), (out4, ref4)

    print("KERNEL_OK")
</pallas_src>

<mosaic_0001>
module attributes {stable_mosaic.version = 11 : i64} {
  func.func @_focal_bce_kernel(%arg0: i32, %arg1: i32, %arg2: memref<8x128xf32, #tpu.memory_space<vmem>>, %arg3: memref<8x128xf32, #tpu.memory_space<vmem>>, %arg4: memref<1x8x128xf32, #tpu.memory_space<vmem>>) attributes {dimension_semantics = [#tpu.dimension_semantics<parallel>, #tpu.dimension_semantics<arbitrary>], iteration_bounds = array<i64: 1, 1>, scalar_prefetch = 0 : i64, scratch_operands = 0 : i64, tpu.core_type = #tpu.core_type<tc>, window_params = [{transform_indices = @transform_0, window_bounds = array<i64: 8, 128>}, {transform_indices = @transform_1, window_bounds = array<i64: 8, 128>}, {transform_indices = @transform_2, window_bounds = array<i64: 1, 8, 128>}]} {
    %c0_i32 = arith.constant 0 : i32
    %0 = arith.cmpi eq, %arg1, %c0_i32 : i32
    %1 = arith.extui %0 : i1 to i32
    %c0_i32_0 = arith.constant 0 : i32
    %2 = arith.cmpi ne, %1, %c0_i32_0 : i32
    scf.if %2 {
      %cst_6 = arith.constant 0.000000e+00 : f32
      %11 = vector.broadcast %cst_6 : f32 to vector<1x8x128xf32>
      %c0 = arith.constant 0 : index
      %c0_7 = arith.constant 0 : index
      %c0_8 = arith.constant 0 : index
      %12 = vector.load %arg4[%c0, %c0_7, %c0_8] : memref<1x8x128xf32, #tpu.memory_space<vmem>>, vector<1x8x128xf32>
      tpu.vector_store %arg4[%c0, %c0_7, %c0_8], %11 {strides = array<i32>} : memref<1x8x128xf32, #tpu.memory_space<vmem>>, vector<1x8x128xf32>,
    } else {
    }
    %c1_i32 = arith.constant 1 : i32
    %3 = arith.muli %arg0, %c1_i32 : i32
    %4 = arith.addi %3, %arg1 : i32
    %c0_i32_1 = arith.constant 0 : i32
    %5 = arith.cmpi ne, %4, %c0_i32_1 : i32
    %6 = arith.extui %5 : i1 to i32
    %cst = arith.constant 2.500000e-01 : f32
    %c0_i32_2 = arith.constant 0 : i32
    %7 = arith.cmpi ne, %6, %c0_i32_2 : i32
    scf.if %7 {
      %c0 = arith.constant 0 : index
      %c0_6 = arith.constant 0 : index
      %11 = vector.load %arg2[%c0, %c0_6] : memref<8x128xf32, #tpu.memory_space<vmem>>, vector<8x128xf32>
      %c0_7 = arith.constant 0 : index
      %c0_8 = arith.constant 0 : index
      %12 = vector.load %arg3[%c0_7, %c0_8] : memref<8x128xf32, #tpu.memory_space<vmem>>, vector<8x128xf32>
      %cst_9 = arith.constant 9.99999974E-6 : f32
      %cst_10 = arith.constant 0.999989986 : f32
      %13 = vector.broadcast %cst_9 : f32 to vector<8x128xf32>
      %14 = arith.maximumf %13, %11 : vector<8x128xf32>
      %15 = vector.broadcast %cst_10 : f32 to vector<8x128xf32>
      %16 = arith.minimumf %15, %14 : vector<8x128xf32>
      %cst_11 = arith.constant 5.000000e-01 : f32
      %17 = vector.broadcast %cst_11 : f32 to vector<8x128xf32>
      %18 = arith.cmpf ogt, %12, %17 : vector<8x128xf32>
      %cst_12 = arith.constant 1.000000e+00 : f32
      %19 = vector.broadcast %cst_12 : f32 to vector<8x128xf32>
      %20 = arith.subf %19, %16 : vector<8x128xf32>
      %21 = arith.select %18, %16, %20 : vector<8x128xi1>, vector<8x128xf32>
      %cst_13 = arith.constant 1.000000e+00 : f32
      %22 = arith.subf %cst_13, %cst : f32
      %23 = vector.broadcast %cst : f32 to vector<8x128xf32>
      %24 = vector.broadcast %22 : f32 to vector<8x128xf32>
      %25 = arith.select %18, %23, %24 : vector<8x128xi1>, vector<8x128xf32>
      %cst_14 = arith.constant 1.000000e+00 : f32
      %26 = vector.broadcast %cst_14 : f32 to vector<8x128xf32>
      %27 = arith.subf %26, %21 : vector<8x128xf32>
      %28 = arith.mulf %27, %27 : vector<8x128xf32>
      %cst_15 = arith.constant 0.000000e+00 : f32
      %29 = vector.broadcast %cst_15 : f32 to vector<8x128xf32>
      %30 = arith.subf %29, %25 : vector<8x128xf32>
      %31 = arith.mulf %30, %28 : vector<8x128xf32>
      %32 = math.log %21 : vector<8x128xf32>
      %33 = arith.mulf %31, %32 : vector<8x128xf32>
      %34 = vector.shape_cast %33 : vector<8x128xf32> to vector<1x8x128xf32>
      %cst_16 = arith.constant dense<0.000000e+00> : vector<8x128xf32>
      %35 = vector.multi_reduction <add>, %34, %cst_16 [0] : vector<1x8x128xf32> to vector<8x128xf32>
      %c0_17 = arith.constant 0 : index
      %c0_18 = arith.constant 0 : index
      %c0_19 = arith.constant 0 : index
      %36 = vector.load %arg4[%c0_17, %c0_18, %c0_19] : memref<1x8x128xf32, #tpu.memory_space<vmem>>, vector<1x8x128xf32>
      %37 = vector.shape_cast %35 : vector<8x128xf32> to vector<1x8x128xf32>
      %38 = arith.addf %36, %37 : vector<1x8x128xf32>
      %c0_20 = arith.constant 0 : index
      %c0_21 = arith.constant 0 : index
      %c0_22 = arith.constant 0 : index
      %39 = vector.load %arg4[%c0_20, %c0_21, %c0_22] : memref<1x8x128xf32, #tpu.memory_space<vmem>>, vector<1x8x128xf32>
      tpu.vector_store %arg4[%c0_20, %c0_21, %c0_22], %38 {strides = array<i32>} : memref<1x8x128xf32, #tpu.memory_space<vmem>>, vector<1x8x128xf32>,
    } else {
    }
    %c0_i32_3 = arith.constant 0 : i32
    %8 = arith.cmpi eq, %4, %c0_i32_3 : i32
    %9 = arith.extui %8 : i1 to i32
    %cst_4 = arith.constant 2.500000e-01 : f32
    %c0_i32_5 = arith.constant 0 : i32
    %10 = arith.cmpi ne, %9, %c0_i32_5 : i32
    scf.if %10 {
      %c0 = arith.constant 0 : index
      %c0_6 = arith.constant 0 : index
      %11 = vector.load %arg2[%c0, %c0_6] : memref<8x128xf32, #tpu.memory_space<vmem>>, vector<8x128xf32>
      %c0_7 = arith.constant 0 : index
      %c0_8 = arith.constant 0 : index
      %12 = vector.load %arg3[%c0_7, %c0_8] : memref<8x128xf32, #tpu.memory_space<vmem>>, vector<8x128xf32>
      %cst_9 = arith.constant 9.99999974E-6 : f32
      %cst_10 = arith.constant 0.999989986 : f32
      %13 = vector.broadcast %cst_9 : f32 to vector<8x128xf32>
      %14 = arith.maximumf %13, %11 : vector<8x128xf32>
      %15 = vector.broadcast %cst_10 : f32 to vector<8x128xf32>
      %16 = arith.minimumf %15, %14 : vector<8x128xf32>
      %cst_11 = arith.constant 5.000000e-01 : f32
      %17 = vector.broadcast %cst_11 : f32 to vector<8x128xf32>
      %18 = arith.cmpf ogt, %12, %17 : vector<8x128xf32>
      %cst_12 = arith.constant 1.000000e+00 : f32
      %19 = vector.broadcast %cst_12 : f32 to vector<8x128xf32>
      %20 = arith.subf %19, %16 : vector<8x128xf32>
      %21 = arith.select %18, %16, %20 : vector<8x128xi1>, vector<8x128xf32>
      %cst_13 = arith.constant 1.000000e+00 : f32
      %22 = arith.subf %cst_13, %cst_4 : f32
      %23 = vector.broadcast %cst_4 : f32 to vector<8x128xf32>
      %24 = vector.broadcast %22 : f32 to vector<8x128xf32>
      %25 = arith.select %18, %23, %24 : vector<8x128xi1>, vector<8x128xf32>
      %cst_14 = arith.constant 1.000000e+00 : f32
      %26 = vector.broadcast %cst_14 : f32 to vector<8x128xf32>
      %27 = arith.subf %26, %21 : vector<8x128xf32>
      %28 = arith.mulf %27, %27 : vector<8x128xf32>
      %cst_15 = arith.constant 0.000000e+00 : f32
      %29 = vector.broadcast %cst_15 : f32 to vector<8x128xf32>
      %30 = arith.subf %29, %25 : vector<8x128xf32>
      %31 = arith.mulf %30, %28 : vector<8x128xf32>
      %32 = math.log %21 : vector<8x128xf32>
      %33 = arith.mulf %31, %32 : vector<8x128xf32>
      %34 = tpu.iota {dimensions = array<i32: 0>} : vector<8x128xi32>
      %35 = tpu.iota {dimensions = array<i32: 1>} : vector<8x128xi32>
      %c0_i32_16 = arith.constant 0 : i32
      %36 = vector.broadcast %c0_i32_16 : i32 to vector<8x128xi32>
      %37 = arith.addi %36, %34 : vector<8x128xi32>
      %c128_i32 = arith.constant 128 : i32
      %38 = vector.broadcast %c128_i32 : i32 to vector<8x128xi32>
      %39 = arith.muli %37, %38 : vector<8x128xi32>
      %40 = arith.addi %39, %35 : vector<8x128xi32>
      %c128_i32_17 = arith.constant 128 : i32
      %41 = vector.broadcast %c128_i32_17 : i32 to vector<8x128xi32>
      %42 = arith.cmpi slt, %40, %41 : vector<8x128xi32>
      %cst_18 = arith.constant 0.000000e+00 : f32
      %43 = vector.broadcast %cst_18 : f32 to vector<8x128xf32>
      %44 = arith.select %42, %33, %43 : vector<8x128xi1>, vector<8x128xf32>
      %45 = vector.shape_cast %44 : vector<8x128xf32> to vector<1x8x128xf32>
      %cst_19 = arith.constant dense<0.000000e+00> : vector<8x128xf32>
      %46 = vector.multi_reduction <add>, %45, %cst_19 [0] : vector<1x8x128xf32> to vector<8x128xf32>
      %c0_20 = arith.constant 0 : index
      %c0_21 = arith.constant 0 : index
      %c0_22 = arith.constant 0 : index
      %47 = vector.load %arg4[%c0_20, %c0_21, %c0_22] : memref<1x8x128xf32, #tpu.memory_space<vmem>>, vector<1x8x128xf32>
      %48 = vector.shape_cast %46 : vector<8x128xf32> to vector<1x8x128xf32>
      %49 = arith.addf %47, %48 : vector<1x8x128xf32>
      %c0_23 = arith.constant 0 : index
      %c0_24 = arith.constant 0 : index
      %c0_25 = arith.constant 0 : index
      %50 = vector.load %arg4[%c0_23, %c0_24, %c0_25] : memref<1x8x128xf32, #tpu.memory_space<vmem>>, vector<1x8x128xf32>
      tpu.vector_store %arg4[%c0_23, %c0_24, %c0_25], %49 {strides = array<i32>} : memref<1x8x128xf32, #tpu.memory_space<vmem>>, vector<1x8x128xf32>,
    } else {
    }
    return
  }
  func.func @transform_0(%arg0: i32, %arg1: i32) -> (i32, i32) {
    %c1_i32 = arith.constant 1 : i32
    %0 = arith.muli %arg0, %c1_i32 : i32
    %1 = arith.addi %0, %arg1 : i32
    %c0_i32 = arith.constant 0 : i32
    %c0_i32_0 = arith.constant 0 : i32
    return %1, %c0_i32 : i32, i32
  }
  func.func @transform_1(%arg0: i32, %arg1: i32) -> (i32, i32) {
    %c1_i32 = arith.constant 1 : i32
    %0 = arith.muli %arg0, %c1_i32 : i32
    %1 = arith.addi %0, %arg1 : i32
    %c0_i32 = arith.constant 0 : i32
    %c0_i32_0 = arith.constant 0 : i32
    return %1, %c0_i32 : i32, i32
  }
  func.func @transform_2(%arg0: i32, %arg1: i32) -> (i32, i32, i32) {
    %c0_i32 = arith.constant 0 : i32
    %c0_i32_0 = arith.constant 0 : i32
    %c0_i32_1 = arith.constant 0 : i32
    return %arg0, %c0_i32, %c0_i32_0 : i32, i32, i32
  }
}

</mosaic_0001>

<llo_original>
// kernel: tpu_custom_call.1
$region0: #{tpu_custom_call.1}
  #allocation0 [shape = 'u32[]', space=smem, size = 0x4, offset = 0x4, fixed_abs, tag = 'smem constant byte address 0x4 - core index']
  #allocation1 [shape = 'u32[72,128]{1,0:T(1,128)}', space=vmem, size = 0x9000, scoped, tag = 'internal scratch']
  %s0 = inlined_call_operand.hbm [shape: f32[1,128], index: 0, kind: input, shape index: {}]
  %s1 = inlined_call_operand.hbm [shape: f32[1,128], index: 1, kind: input, shape index: {}]
  %s2 = inlined_call_operand.hbm [shape: f32[1,8,128], index: 2, kind: output, shape index: {}]
  %s3 = sld [smem:[#allocation0]]
  $region38: #{tpu_custom_call.1} parent=0
    _
  %s5 = ssub.s32 1, %s3
  %s6 = scalar_select 0, %s5, %s3
  $region1: #{tpu_custom_call.1} parent=0
    #allocation2 [shape = 'u8[4096]{0}', space=vmem, size = 0x1000, scoped, tag = 'input window, operand 0, single buffered']
    #allocation3 [shape = 's32[1]{0}', space=sflag, size = 0x4, scoped, tag = 'scoped memory for tpu_custom_call.1']
    #allocation4 [shape = 's32[1]{0}', space=sflag, size = 0x4, scoped, tag = 'scoped memory for tpu_custom_call.1']
    #allocation5 [shape = 'u8[4096]{0}', space=vmem, size = 0x1000, scoped, tag = 'input window, operand 1, single buffered']
    #allocation6 [shape = 's32[1]{0}', space=sflag, size = 0x4, scoped, tag = 'scoped memory for tpu_custom_call.1']
    #allocation7 [shape = 'u8[4096]{0}', space=vmem, size = 0x1000, scoped, tag = 'output window, operand 0, single buffered']
    %7 = vsyncpa [#allocation3], 0
    %8 = vsyncpa [#allocation6], 0
    %9 = vsyncpa [#allocation4], 0
    // Predicated region
    $region2: #{tpu_custom_call.1} parent=1 // pred_check
      _
    $region3: #{tpu_custom_call.1} parent=1 // pred_check_branch
      %11 = sbr.rel (0) target = $region5
    $region4: #{tpu_custom_call.1} parent=1 // pred_region
      %s12 = sadd.s32 0, 0
      %s13 = smul.u32 8, %s12
      %s14 = ssub.s32 1, %s13
      %s15 = ssub.s32 8, %s14
      %s16 = sshll.u32 %s15, 4
      %17 = vsyncadd [#allocation3], %s16
      %p18 = scmp.ne.s32.totalorder 0, %s14
      %s19 = scalar_lea.hbm %s0, %s13
      %s20 = sshll.u32 %s19, 4
      %s21 = int_to_ptr.hbm [resolvable:$true] %s20
      %s22 = sshll.u32 [#allocation2], 4
      %s23 = int_to_ptr.vmem [resolvable:$true] %s22
      %s24 = sshll.u32 %s14, 4
      %28 = dma.hbm_to_vmem [thread:$0]  (%p18), %s21, %s24, %s23, [#allocation3], 16, 16, 1
    $region5: #{tpu_custom_call.1} parent=1 // pred_fallthru
      _
    // Predicated region
    $region6: #{tpu_custom_call.1} parent=1 // pred_check
      _
    $region7: #{tpu_custom_call.1} parent=1 // pred_check_branch
      %30 = sbr.rel (0) target = $region9
    $region8: #{tpu_custom_call.1} parent=1 // pred_region
      %s31 = sadd.s32 0, 0
      %s32 = smul.u32 8, %s31
      %s33 = ssub.s32 1, %s32
      %s34 = ssub.s32 8, %s33
      %s35 = sshll.u32 %s34, 4
      %36 = vsyncadd [#allocation6], %s35
      %p37 = scmp.ne.s32.totalorder 0, %s33
      %s38 = scalar_lea.hbm %s1, %s32
      %s39 = sshll.u32 %s38, 4
      %s40 = int_to_ptr.hbm [resolvable:$true] %s39
      %s41 = sshll.u32 [#allocation5], 4
      %s42 = int_to_ptr.vmem [resolvable:$true] %s41
      %s43 = sshll.u32 %s33, 4
      %47 = dma.hbm_to_vmem [thread:$0]  (%p37), %s40, %s43, %s42, [#allocation6], 16, 16, 1
    $region9: #{tpu_custom_call.1} parent=1 // pred_fallthru
      _
    // Predicated region
    $region10: #{tpu_custom_call.1} parent=1 // pred_check
      _
    $region11: #{tpu_custom_call.1} parent=1 // pred_check_branch
      %49 = sbr.rel (0) target = $region13
    $region12: #{tpu_custom_call.1} parent=1 // pred_region
      %51 = dma.done [#allocation3], 128
    $region13: #{tpu_custom_call.1} parent=1 // pred_fallthru
      _
    // Predicated region
    $region14: #{tpu_custom_call.1} parent=1 // pred_check
      _
    $region15: #{tpu_custom_call.1} parent=1 // pred_check_branch
      %53 = sbr.rel (0) target = $region17
    $region16: #{tpu_custom_call.1} parent=1 // pred_region
      %55 = dma.done [#allocation6], 128
    $region17: #{tpu_custom_call.1} parent=1 // pred_fallthru
      _
    %s56 = sadd.s32 0, 0
    %s57 = smul.u32 8, %s56
    %s58 = ssub.s32 1, %s57
    %s59 = sadd.s32 0, 0
    %s60 = smul.u32 8, %s59
    %s61 = ssub.s32 1, %s60
    %p62 = scmp.eq.s32.totalorder 0, 0
    // Predicated region
    $region18: #{tpu_custom_call.1} parent=1 // pred_check
      %p63 = pneg %p62
    $region19: #{tpu_custom_call.1} parent=1 // pred_check_branch
      %65 = sbr.rel (%p63) target = $region21
    $region20: #{tpu_custom_call.1} parent=1 // pred_region
      %66 = vst [vmem:[#allocation7] sm:$0xff] 0.0
    $region21: #{tpu_custom_call.1} parent=1 // pred_fallthru
      _
    %s67 = sadd.s32 0, 0
    %p68 = scmp.ne.s32.totalorder %s67, 0
    // Predicated region
    $region22: #{tpu_custom_call.1} parent=1 // pred_check
      %p69 = pneg %p68
    $region23: #{tpu_custom_call.1} parent=1 // pred_check_branch
      %71 = sbr.rel (%p69) target = $region25
    $region24: #{tpu_custom_call.1} parent=1 // pred_region
      %v72 = vld [vmem:[#allocation2] sm:$0xff]
      %v73 = vld [vmem:[#allocation5] sm:$0xff]
      %v74 = vmax.f32 %v72, 1e-05
      %v75 = vmin.f32 %v74, 0.99999
      %vm76 = vcmp.gt.f32.partialorder %v73, 0.5
      %v77 = vsub.f32 1.0, %v75
      %v78 = vsel %vm76, %v75, %v77
      %v79 = vsel %vm76, 0.25, 0.75
      %v80 = vsub.f32 1.0, %v78
      %v81 = vmul.f32 %v80, %v80
      %v82 = vsub.f32 0.0, %v79
      %v83 = vmul.f32 %v82, %v81
      %v84 = vlog2.pop %v78
      %v85 = vmul.f32 %v84, 0.6931472
      %v86 = vmul.f32 %v83, %v85
      %v87 = vadd.f32 %v86, 0.0
      %v88 = vld [vmem:[#allocation7] sm:$0xff]
      %v89 = vadd.f32 %v88, %v87
      %90 = vst [vmem:[#allocation7] sm:$0xff] %v89
    $region25: #{tpu_custom_call.1} parent=1 // pred_fallthru
      _
    %p91 = scmp.eq.s32.totalorder %s67, 0
    // Predicated region
    $region26: #{tpu_custom_call.1} parent=1 // pred_check
      %p92 = pneg %p91
    $region27: #{tpu_custom_call.1} parent=1 // pred_check_branch
      %94 = sbr.rel (%p92) target = $region29
    $region28: #{tpu_custom_call.1} parent=1 // pred_region
      %v95 = vld [vmem:[#allocation2] sm:$0xff]
      %v96 = vld [vmem:[#allocation5] sm:$0xff]
      %v97 = vmax.f32 %v95, 1e-05
      %v98 = vmin.f32 %v97, 0.99999
      %vm99 = vcmp.gt.f32.partialorder %v96, 0.5
      %v100 = vsub.f32 1.0, %v98
      %v101 = vsel %vm99, %v98, %v100
      %v102 = vsel %vm99, 0.25, 0.75
      %v103 = vsub.f32 1.0, %v101
      %v104 = vmul.f32 %v103, %v103
      %v105 = vsub.f32 0.0, %v102
      %v106 = vmul.f32 %v105, %v104
      %v107 = vlog2.pop %v101
      %v108 = vmul.f32 %v107, 0.6931472
      %v109 = vmul.f32 %v106, %v108
      %v110 = vlaneseq
      %v111 = vshrl.u32 %v110, 7
      %v112 = vlaneseq
      %v113 = vand.u32 %v112, 127
      %v114 = vmul.u32 %v111, 128
      %v115 = vadd.s32 %v114, %v113
      %vm116 = vcmp.lt.s32.totalorder %v115, 128
      %v117 = vsel %vm116, %v109, 0.0
      %v118 = vadd.f32 %v117, 0.0
      %v119 = vld [vmem:[#allocation7] sm:$0xff]
      %v120 = vadd.f32 %v119, %v118
      %121 = vst [vmem:[#allocation7] sm:$0xff] %v120
    $region29: #{tpu_custom_call.1} parent=1 // pred_fallthru
      _
    // Predicated region
    $region30: #{tpu_custom_call.1} parent=1 // pred_check
      _
    $region31: #{tpu_custom_call.1} parent=1 // pred_check_branch
      %123 = sbr.rel (0) target = $region33
    $region32: #{tpu_custom_call.1} parent=1 // pred_region
      %125 = vsyncadd [#allocation4], 0
      %s127 = sshll.u32 [#allocation7], 4
      %s128 = int_to_ptr.vmem [resolvable:$true] %s127
      %s129 = sshll.u32 %s2, 4
      %s130 = int_to_ptr.hbm [resolvable:$true] %s129
      %132 = dma.vmem_to_hbm [thread:$0]  %s128, 128, %s130, [#allocation4]
    $region33: #{tpu_custom_call.1} parent=1 // pred_fallthru
      _
    // Predicated region
    $region34: #{tpu_custom_call.1} parent=1 // pred_check
      _
    $region35: #{tpu_custom_call.1} parent=1 // pred_check_branch
      %134 = sbr.rel (0) target = $region37
    $region36: #{tpu_custom_call.1} parent=1 // pred_region
      %136 = dma.done [#allocation4], 128
    $region37: #{tpu_custom_call.1} parent=1 // pred_fallthru
      _
    %137 = vsyncpa [#allocation3], 1
    %138 = vsyncpa [#allocation6], 1
    %139 = vsyncpa [#allocation4], 1

</llo_original>
